<compile_context>
chip_gen: v7x
topology: tpu7x:2x2x1
jax: 0.10.0
libtpu: 0.0.40
codegen_flags: <defaults>
</compile_context>

<pallas_src>
import functools

import jax
import jax.numpy as jnp
from jax.experimental import pallas as pl
from jax.experimental.pallas import tpu as pltpu


def _round_up(v: int, m: int) -> int:
    return (v + m - 1) // m * m


def _choose_b_tile(B: int, N: int) -> int:
    """Pack batch elements per grid step so the MXU matmul sees >= ~256 rows,
    while keeping >= 2 grid steps (both v7x TensorCores fed) and b_tile | B."""
    if B <= 1 or N >= 256 or N % 8 != 0:
        return 1
    cap = min(max(1, 256 // N), max(1, B // 2))
    bt = 1
    for d in range(1, cap + 1):
        if B % d == 0:
            bt = d
    return bt


def _vmem_capacity_bytes() -> int:
    try:
        cap = getattr(pltpu.get_tpu_info(), "vmem_capacity_bytes", None)
        if cap:
            return int(cap)
    except Exception:
        pass
    return 64 * 1024 * 1024   # v7x per-TensorCore VMEM; safe lower bound for all gens.


def _vmem_limit_bytes(b_tile: int, n_tok: int, d_pad: int, k_pad: int) -> int:
    f32 = 4
    rows = b_tile * n_tok
    need = (2 * rows * d_pad * f32      # x block, double buffered
            + 2 * rows * k_pad * f32    # assignments block, double buffered
            + 2 * d_pad * k_pad * f32   # weight (<= 2 buffers)
            + 4 * rows * k_pad * f32    # live f32 temporaries (logits, m, exp scratch)
            + rows * d_pad * f32        # normalized-x copy
            + (2 << 20))                # slack for compiler-internal scratch
    cap = _vmem_capacity_bytes()
    return int(min(max(need, 32 << 20), int(cap * 0.85)))


def _weight_spec(d_pad: int, k_pad: int, *, single_buffer: bool) -> pl.BlockSpec:
    idx = lambda b: (0, 0)
    if single_buffer:
        try:
            # Grid-invariant operand: no point double-buffering it.
            return pl.BlockSpec((d_pad, k_pad), idx, pipeline_mode=pl.Buffered(1))
        except Exception:
            pass
    return pl.BlockSpec((d_pad, k_pad), idx)


def _online_clustering_kernel(x_ref, w_ref, assign_ref, loss_ref, *,
                              n_sk_iter: int, inv_target_temp: float,
                              inv_pred_temp: float, eps: float, k_real: int):
    # x_ref: (b_tile, N, Dp); w_ref: (Dp, Kp). One packed batch block per grid step.
    bt, n_tok, d_pad = x_ref.shape
    k_pad = w_ref.shape[1]

    x = x_ref[...].astype(jnp.float32).reshape(bt * n_tok, d_pad)
    w = w_ref[...].astype(jnp.float32)

    # F.normalize(x, dim=-1, p=2, eps=1e-7): reciprocal only on the (rows, 1) norm,
    # then a broadcast multiply over the big tile (no full-tile divide).
    norm = jnp.sqrt(jnp.sum(x * x, axis=-1, keepdims=True))
    x_n = x * pl.reciprocal(jnp.maximum(norm, 1e-7), approx=False)

    # Linear(in_dim, out_dim, bias=False): one 2-D MXU matmul over the packed batch.
    # Zero-padded D rows/cols contribute exact zeros.
    logits = jnp.dot(x_n, w, preferred_element_type=jnp.float32)   # (bt*N, Kp)
    logits = logits.reshape(bt, n_tok, k_pad)

    # Additive pad-column bias: 0 on real clusters, -1e30 on zero-padded ones.
    if k_real < k_pad:
        col_bias = jnp.where(
            jax.lax.broadcasted_iota(jnp.int32, (1, 1, k_pad), 2) < k_real,
            0.0, -1e30).astype(jnp.float32)
    else:
        col_bias = None

    # Log-softmax denominator for the loss ((.., 1) vectors only) — computed up front so
    # only `logits` and `m` remain live (N, Kp)-sized across the unrolled sinkhorn loop.
    pred = logits * inv_pred_temp
    if col_bias is not None:
        pred = pred + col_bias                       # pad cols drop out of the lse
    pmax = jnp.max(pred, axis=-1, keepdims=True)
    lse = jnp.log(jnp.sum(jnp.exp(pred - pmax), axis=-1, keepdims=True)) + pmax

    # ---- sinkhorn_knopp(logits / target_temp, n_iterations) ----
    m = logits * inv_target_temp
    shift = jnp.max(m, axis=-2, keepdims=True)       # stable_exp: max over tokens
    m = m + (50.0 - shift)
    if col_bias is not None:
        m = m + col_bias                             # exp underflows to exactly 0 on pad cols
    m = jnp.exp(m)
    for _ in range(n_sk_iter):
        col_sum = jnp.sum(m, axis=-2, keepdims=True)           # (bt, 1, Kp) over tokens
        m = m * pl.reciprocal(col_sum + eps, approx=False)
        row_sum = jnp.sum(m, axis=-1, keepdims=True)           # (bt, N, 1) over clusters
        m = m * pl.reciprocal(row_sum + eps, approx=False)
    assign_ref[...] = m.astype(assign_ref.dtype)

    # ---- loss: -sum(tgt * log_softmax(pred / pred_temp, -1)) summed over this block ----
    # log_softmax recomputed on the fly from logits; pad cols have m == 0 exactly so their
    # (finite) -lse term contributes nothing.
    log_sm = logits * inv_pred_temp - lse
    loss_sum = -jnp.sum(m * log_sm)
    loss_ref[...] = jnp.broadcast_to(
        jnp.reshape(loss_sum, (1, 1, 1)), loss_ref.shape).astype(loss_ref.dtype)


def online_clustering_forward(x, w_t, *, n_sk_iter=3, target_temp=0.1,
                              pred_temp=0.12, eps=1e-8):
    """x: (B, N, in_dim) float32; w_t: (in_dim, out_dim) float32.
    Returns (assignments (B, N, out_dim) float32, loss scalar float32)."""
    B, N, D = x.shape
    K = w_t.shape[1]
    d_pad = _round_up(D, 128)
    k_pad = _round_up(K, 128)

    x_p = x if d_pad == D else jnp.pad(x, ((0, 0), (0, 0), (0, d_pad - D)))
    w_p = w_t
    if d_pad != D:
        w_p = jnp.pad(w_p, ((0, d_pad - D), (0, 0)))
    if k_pad != K:
        w_p = jnp.pad(w_p, ((0, 0), (0, k_pad - K)))

    b_tile = _choose_b_tile(B, N)
    n_steps = B // b_tile

    kernel = functools.partial(
        _online_clustering_kernel,
        n_sk_iter=int(n_sk_iter),
        inv_target_temp=float(1.0 / target_temp),
        inv_pred_temp=float(1.0 / pred_temp),
        eps=float(eps), k_real=int(K))

    cost = pl.CostEstimate(
        flops=2 * B * N * d_pad * k_pad + (6 + 4 * n_sk_iter) * B * N * k_pad,
        transcendentals=2 * B * N * k_pad + 2 * B * N,
        bytes_accessed=4 * (x_p.size + w_p.size + B * N * k_pad + n_steps * 128))

    out_shape = (jax.ShapeDtypeStruct((B, N, k_pad), jnp.float32),
                 jax.ShapeDtypeStruct((n_steps, 1, 128), jnp.float32))
    x_spec = pl.BlockSpec((b_tile, N, d_pad), lambda b: (b, 0, 0))
    out_specs = (pl.BlockSpec((b_tile, N, k_pad), lambda b: (b, 0, 0)),
                 pl.BlockSpec((1, 1, 128), lambda b: (b, 0, 0)))
    cparams = pltpu.CompilerParams(
        dimension_semantics=("parallel",),
        vmem_limit_bytes=_vmem_limit_bytes(b_tile, N, d_pad, k_pad))

    def _run(w_spec):
        return pl.pallas_call(
            kernel,
            grid=(n_steps,),
            out_shape=out_shape,
            in_specs=[x_spec, w_spec],
            out_specs=out_specs,
            compiler_params=cparams,
            cost_estimate=cost,
        )(x_p, w_p)

    try:
        assignments_p, loss_per = _run(_weight_spec(d_pad, k_pad, single_buffer=True))
    except Exception:
        # Single-buffered pipeline_mode unsupported on this JAX/Mosaic: use the default.
        assignments_p, loss_per = _run(_weight_spec(d_pad, k_pad, single_buffer=False))

    assignments = assignments_p[..., :K] if k_pad != K else assignments_p
    loss = jnp.sum(loss_per[:, 0, 0]) / (B * N)
    return assignments, loss


def _reference_forward(x, w_t, *, n_sk_iter, target_temp, pred_temp, eps=1e-8):
    """Pure-JAX reference mirroring the PyTorch module (single device, no dist)."""
    norm = jnp.sqrt(jnp.sum(x * x, axis=-1, keepdims=True))
    x_n = x / jnp.maximum(norm, 1e-7)
    logits = x_n @ w_t
    m = logits / target_temp
    shift = jnp.max(m, axis=-2, keepdims=True)
    m = jnp.exp(m + (50.0 - shift))
    for _ in range(n_sk_iter):
        m = m / (jnp.sum(m, axis=-2, keepdims=True) + eps)
        m = m / (jnp.sum(m, axis=-1, keepdims=True) + eps)
    pred = logits / pred_temp
    log_sm = jax.nn.log_softmax(pred, axis=-1)
    loss = -jnp.sum(m * log_sm, axis=-1).mean()
    return m, loss


if __name__ == "__main__":
    B, N, IN_DIM, OUT_DIM = 2, 8, 32, 16
    N_SK_ITER = 3
    TARGET_TEMP = 0.1
    PRED_TEMP = 0.12

    key = jax.random.PRNGKey(0)
    kx, kw = jax.random.split(key)
    x = jax.random.normal(kx, (B, N, IN_DIM), dtype=jnp.float32)
    # torch Linear weight is (out_dim, in_dim), init normal(std=1); store transposed.
    w = jax.random.normal(kw, (OUT_DIM, IN_DIM), dtype=jnp.float32)
    w_t = w.T  # (in_dim, out_dim)

    assignments, loss = online_clustering_forward(
        x, w_t, n_sk_iter=N_SK_ITER, target_temp=TARGET_TEMP,
        pred_temp=PRED_TEMP)
    jax.block_until_ready((assignments, loss))

    ref_assign, ref_loss = _reference_forward(
        x, w_t, n_sk_iter=N_SK_ITER, target_temp=TARGET_TEMP,
        pred_temp=PRED_TEMP)
    assert assignments.shape == (B, N, OUT_DIM)
    assert jnp.allclose(assignments, ref_assign, atol=1e-5, rtol=1e-5)
    assert jnp.allclose(loss, ref_loss, atol=1e-5, rtol=1e-5)

    print("KERNEL_OK")
</pallas_src>

<mosaic_0001>
module attributes {stable_mosaic.version = 11 : i64} {
  func.func @_online_clustering_kernel(%arg0: i32, %arg1: memref<1x8x128xf32, #tpu.memory_space<vmem>>, %arg2: memref<128x128xf32, #tpu.memory_space<vmem>>, %arg3: memref<1x8x128xf32, #tpu.memory_space<vmem>>, %arg4: memref<1x1x128xf32, #tpu.memory_space<vmem>>) attributes {dimension_semantics = [#tpu.dimension_semantics<parallel>], iteration_bounds = array<i64: 2>, scalar_prefetch = 0 : i64, scratch_operands = 0 : i64, tpu.core_type = #tpu.core_type<tc>, window_params = [{transform_indices = @transform_0, window_bounds = array<i64: 1, 8, 128>}, {pipeline_mode = #tpu.pipeline_mode<synchronous>, transform_indices = @transform_1, window_bounds = array<i64: 128, 128>}, {transform_indices = @transform_2, window_bounds = array<i64: 1, 8, 128>}, {transform_indices = @transform_3, window_bounds = array<i64: 1, 1, 128>}]} {
    %c0 = arith.constant 0 : index
    %c0_0 = arith.constant 0 : index
    %c0_1 = arith.constant 0 : index
    %0 = vector.load %arg1[%c0, %c0_0, %c0_1] : memref<1x8x128xf32, #tpu.memory_space<vmem>>, vector<1x8x128xf32>
    %1 = vector.shape_cast %0 : vector<1x8x128xf32> to vector<8x128xf32>
    %c0_2 = arith.constant 0 : index
    %c0_3 = arith.constant 0 : index
    %2 = vector.load %arg2[%c0_2, %c0_3] : memref<128x128xf32, #tpu.memory_space<vmem>>, vector<128x128xf32>
    %3 = arith.mulf %1, %1 : vector<8x128xf32>
    %cst = arith.constant dense<0.000000e+00> : vector<8xf32>
    %4 = vector.multi_reduction <add>, %3, %cst [1] : vector<8x128xf32> to vector<8xf32>
    %5 = vector.shape_cast %4 : vector<8xf32> to vector<8x1xf32>
    %6 = math.sqrt %5 : vector<8x1xf32>
    %cst_4 = arith.constant 1.000000e-07 : f32
    %7 = vector.broadcast %cst_4 : f32 to vector<8x1xf32>
    %8 = arith.maximumf %6, %7 : vector<8x1xf32>
    %9 = tpu.reciprocal %8 : vector<8x1xf32> -> vector<8x1xf32>
    %10 = vector.broadcast %9 : vector<8x1xf32> to vector<8x128xf32>
    %11 = arith.mulf %1, %10 : vector<8x128xf32>
    %cst_5 = arith.constant dense<0.000000e+00> : vector<8x128xf32>
    %12 = tpu.matmul %11, %2, %cst_5 {dimension_numbers = #tpu.dot_dimension_numbers<[1], [0], [0], [1], [0, 0, 1, 1], [], []>} : vector<8x128xf32>, vector<128x128xf32>, vector<8x128xf32> -> vector<8x128xf32>
    %13 = vector.shape_cast %12 : vector<8x128xf32> to vector<1x8x128xf32>
    %14 = tpu.iota {dimensions = array<i32: 2>} : vector<1x1x128xi32>
    %c16_i32 = arith.constant 16 : i32
    %15 = vector.broadcast %c16_i32 : i32 to vector<1x1x128xi32>
    %16 = arith.cmpi slt, %14, %15 : vector<1x1x128xi32>
    %cst_6 = arith.constant 0.000000e+00 : f32
    %cst_7 = arith.constant -1.000000e+30 : f32
    %17 = vector.broadcast %cst_6 : f32 to vector<1x1x128xf32>
    %18 = vector.broadcast %cst_7 : f32 to vector<1x1x128xf32>
    %19 = arith.select %16, %17, %18 : vector<1x1x128xi1>, vector<1x1x128xf32>
    %cst_8 = arith.constant 8.33333301 : f32
    %20 = vector.broadcast %cst_8 : f32 to vector<1x8x128xf32>
    %21 = arith.mulf %13, %20 : vector<1x8x128xf32>
    %22 = vector.broadcast %19 : vector<1x1x128xf32> to vector<1x8x128xf32>
    %23 = arith.addf %21, %22 : vector<1x8x128xf32>
    %cst_9 = arith.constant dense<0xFF800000> : vector<1x8xf32>
    %24 = vector.multi_reduction <maximumf>, %23, %cst_9 [2] : vector<1x8x128xf32> to vector<1x8xf32>
    %25 = vector.shape_cast %24 : vector<1x8xf32> to vector<1x8x1xf32>
    %26 = vector.broadcast %25 : vector<1x8x1xf32> to vector<1x8x128xf32>
    %27 = arith.subf %23, %26 : vector<1x8x128xf32>
    %28 = math.exp %27 : vector<1x8x128xf32>
    %cst_10 = arith.constant dense<0.000000e+00> : vector<1x8xf32>
    %29 = vector.multi_reduction <add>, %28, %cst_10 [2] : vector<1x8x128xf32> to vector<1x8xf32>
    %30 = vector.shape_cast %29 : vector<1x8xf32> to vector<1x8x1xf32>
    %31 = math.log %30 : vector<1x8x1xf32>
    %32 = arith.addf %31, %25 : vector<1x8x1xf32>
    %cst_11 = arith.constant 1.000000e+01 : f32
    %33 = vector.broadcast %cst_11 : f32 to vector<1x8x128xf32>
    %34 = arith.mulf %13, %33 : vector<1x8x128xf32>
    %cst_12 = arith.constant dense<0xFF800000> : vector<1x128xf32>
    %35 = vector.multi_reduction <maximumf>, %34, %cst_12 [1] : vector<1x8x128xf32> to vector<1x128xf32>
    %36 = vector.shape_cast %35 : vector<1x128xf32> to vector<1x1x128xf32>
    %cst_13 = arith.constant 5.000000e+01 : f32
    %37 = vector.broadcast %cst_13 : f32 to vector<1x1x128xf32>
    %38 = arith.subf %37, %36 : vector<1x1x128xf32>
    %39 = vector.broadcast %38 : vector<1x1x128xf32> to vector<1x8x128xf32>
    %40 = arith.addf %34, %39 : vector<1x8x128xf32>
    %41 = vector.broadcast %19 : vector<1x1x128xf32> to vector<1x8x128xf32>
    %42 = arith.addf %40, %41 : vector<1x8x128xf32>
    %43 = math.exp %42 : vector<1x8x128xf32>
    %cst_14 = arith.constant dense<0.000000e+00> : vector<1x128xf32>
    %44 = vector.multi_reduction <add>, %43, %cst_14 [1] : vector<1x8x128xf32> to vector<1x128xf32>
    %45 = vector.shape_cast %44 : vector<1x128xf32> to vector<1x1x128xf32>
    %cst_15 = arith.constant 9.99999993E-9 : f32
    %46 = vector.broadcast %cst_15 : f32 to vector<1x1x128xf32>
    %47 = arith.addf %45, %46 : vector<1x1x128xf32>
    %48 = tpu.reciprocal %47 : vector<1x1x128xf32> -> vector<1x1x128xf32>
    %49 = vector.broadcast %48 : vector<1x1x128xf32> to vector<1x8x128xf32>
    %50 = arith.mulf %43, %49 : vector<1x8x128xf32>
    %cst_16 = arith.constant dense<0.000000e+00> : vector<1x8xf32>
    %51 = vector.multi_reduction <add>, %50, %cst_16 [2] : vector<1x8x128xf32> to vector<1x8xf32>
    %52 = vector.shape_cast %51 : vector<1x8xf32> to vector<1x8x1xf32>
    %cst_17 = arith.constant 9.99999993E-9 : f32
    %53 = vector.broadcast %cst_17 : f32 to vector<1x8x1xf32>
    %54 = arith.addf %52, %53 : vector<1x8x1xf32>
    %55 = tpu.reciprocal %54 : vector<1x8x1xf32> -> vector<1x8x1xf32>
    %56 = vector.broadcast %55 : vector<1x8x1xf32> to vector<1x8x128xf32>
    %57 = arith.mulf %50, %56 : vector<1x8x128xf32>
    %cst_18 = arith.constant dense<0.000000e+00> : vector<1x128xf32>
    %58 = vector.multi_reduction <add>, %57, %cst_18 [1] : vector<1x8x128xf32> to vector<1x128xf32>
    %59 = vector.shape_cast %58 : vector<1x128xf32> to vector<1x1x128xf32>
    %cst_19 = arith.constant 9.99999993E-9 : f32
    %60 = vector.broadcast %cst_19 : f32 to vector<1x1x128xf32>
    %61 = arith.addf %59, %60 : vector<1x1x128xf32>
    %62 = tpu.reciprocal %61 : vector<1x1x128xf32> -> vector<1x1x128xf32>
    %63 = vector.broadcast %62 : vector<1x1x128xf32> to vector<1x8x128xf32>
    %64 = arith.mulf %57, %63 : vector<1x8x128xf32>
    %cst_20 = arith.constant dense<0.000000e+00> : vector<1x8xf32>
    %65 = vector.multi_reduction <add>, %64, %cst_20 [2] : vector<1x8x128xf32> to vector<1x8xf32>
    %66 = vector.shape_cast %65 : vector<1x8xf32> to vector<1x8x1xf32>
    %cst_21 = arith.constant 9.99999993E-9 : f32
    %67 = vector.broadcast %cst_21 : f32 to vector<1x8x1xf32>
    %68 = arith.addf %66, %67 : vector<1x8x1xf32>
    %69 = tpu.reciprocal %68 : vector<1x8x1xf32> -> vector<1x8x1xf32>
    %70 = vector.broadcast %69 : vector<1x8x1xf32> to vector<1x8x128xf32>
    %71 = arith.mulf %64, %70 : vector<1x8x128xf32>
    %cst_22 = arith.constant dense<0.000000e+00> : vector<1x128xf32>
    %72 = vector.multi_reduction <add>, %71, %cst_22 [1] : vector<1x8x128xf32> to vector<1x128xf32>
    %73 = vector.shape_cast %72 : vector<1x128xf32> to vector<1x1x128xf32>
    %cst_23 = arith.constant 9.99999993E-9 : f32
    %74 = vector.broadcast %cst_23 : f32 to vector<1x1x128xf32>
    %75 = arith.addf %73, %74 : vector<1x1x128xf32>
    %76 = tpu.reciprocal %75 : vector<1x1x128xf32> -> vector<1x1x128xf32>
    %77 = vector.broadcast %76 : vector<1x1x128xf32> to vector<1x8x128xf32>
    %78 = arith.mulf %71, %77 : vector<1x8x128xf32>
    %cst_24 = arith.constant dense<0.000000e+00> : vector<1x8xf32>
    %79 = vector.multi_reduction <add>, %78, %cst_24 [2] : vector<1x8x128xf32> to vector<1x8xf32>
    %80 = vector.shape_cast %79 : vector<1x8xf32> to vector<1x8x1xf32>
    %cst_25 = arith.constant 9.99999993E-9 : f32
    %81 = vector.broadcast %cst_25 : f32 to vector<1x8x1xf32>
    %82 = arith.addf %80, %81 : vector<1x8x1xf32>
    %83 = tpu.reciprocal %82 : vector<1x8x1xf32> -> vector<1x8x1xf32>
    %84 = vector.broadcast %83 : vector<1x8x1xf32> to vector<1x8x128xf32>
    %85 = arith.mulf %78, %84 : vector<1x8x128xf32>
    %c0_26 = arith.constant 0 : index
    %c0_27 = arith.constant 0 : index
    %c0_28 = arith.constant 0 : index
    %86 = vector.load %arg3[%c0_26, %c0_27, %c0_28] : memref<1x8x128xf32, #tpu.memory_space<vmem>>, vector<1x8x128xf32>
    tpu.vector_store %arg3[%c0_26, %c0_27, %c0_28], %85 {strides = array<i32>} : memref<1x8x128xf32, #tpu.memory_space<vmem>>, vector<1x8x128xf32>,
    %cst_29 = arith.constant 8.33333301 : f32
    %87 = vector.broadcast %cst_29 : f32 to vector<1x8x128xf32>
    %88 = arith.mulf %13, %87 : vector<1x8x128xf32>
    %89 = vector.broadcast %32 : vector<1x8x1xf32> to vector<1x8x128xf32>
    %90 = arith.subf %88, %89 : vector<1x8x128xf32>
    %91 = arith.mulf %85, %90 : vector<1x8x128xf32>
    %92 = vector.shape_cast %91 : vector<1x8x128xf32> to vector<1x1x8x128xf32>
    %cst_30 = arith.constant dense<0.000000e+00> : vector<1xf32>
    %93 = vector.multi_reduction <add>, %92, %cst_30 [1, 2, 3] : vector<1x1x8x128xf32> to vector<1xf32>
    %94 = vector.shape_cast %93 : vector<1xf32> to vector<1x1x1x1xf32>
    %95 = vector.extract %94[0, 0, 0, 0] : f32 from vector<1x1x1x1xf32>
    %cst_31 = arith.constant 0.000000e+00 : f32
    %96 = arith.subf %cst_31, %95 : f32
    %97 = vector.broadcast %96 : f32 to vector<1x1x1xf32>
    %98 = vector.shape_cast %97 : vector<1x1x1xf32> to vector<1x1x1xf32>
    %99 = vector.broadcast %98 : vector<1x1x1xf32> to vector<1x1x128xf32>
    %c0_32 = arith.constant 0 : index
    %c0_33 = arith.constant 0 : index
    %c0_34 = arith.constant 0 : index
    %100 = vector.load %arg4[%c0_32, %c0_33, %c0_34] : memref<1x1x128xf32, #tpu.memory_space<vmem>>, vector<1x1x128xf32>
    tpu.vector_store %arg4[%c0_32, %c0_33, %c0_34], %99 {strides = array<i32>} : memref<1x1x128xf32, #tpu.memory_space<vmem>>, vector<1x1x128xf32>,
    return
  }
  func.func @transform_0(%arg0: i32) -> (i32, i32, i32) {
    %c0_i32 = arith.constant 0 : i32
    %c0_i32_0 = arith.constant 0 : i32
    %c0_i32_1 = arith.constant 0 : i32
    return %arg0, %c0_i32, %c0_i32_0 : i32, i32, i32
  }
  func.func @transform_1(%arg0: i32) -> (i32, i32) {
    %c0_i32 = arith.constant 0 : i32
    %c0_i32_0 = arith.constant 0 : i32
    %c0_i32_1 = arith.constant 0 : i32
    return %c0_i32, %c0_i32_0 : i32, i32
  }
  func.func @transform_2(%arg0: i32) -> (i32, i32, i32) {
    %c0_i32 = arith.constant 0 : i32
    %c0_i32_0 = arith.constant 0 : i32
    %c0_i32_1 = arith.constant 0 : i32
    return %arg0, %c0_i32, %c0_i32_0 : i32, i32, i32
  }
  func.func @transform_3(%arg0: i32) -> (i32, i32, i32) {
    %c0_i32 = arith.constant 0 : i32
    %c0_i32_0 = arith.constant 0 : i32
    %c0_i32_1 = arith.constant 0 : i32
    return %arg0, %c0_i32, %c0_i32_0 : i32, i32, i32
  }
}

module attributes {stable_mosaic.version = 11 : i64} {
  func.func @_online_clustering_kernel(%arg0: i32, %arg1: memref<1x8x128xf32, #tpu.memory_space<vmem>>, %arg2: memref<128x128xf32, #tpu.memory_space<vmem>>, %arg3: memref<1x8x128xf32, #tpu.memory_space<vmem>>, %arg4: memref<1x1x128xf32, #tpu.memory_space<vmem>>) attributes {dimension_semantics = [#tpu.dimension_semantics<parallel>], iteration_bounds = array<i64: 2>, scalar_prefetch = 0 : i64, scratch_operands = 0 : i64, tpu.core_type = #tpu.core_type<tc>, window_params = [{transform_indices = @transform_0, window_bounds = array<i64: 1, 8, 128>}, {pipeline_mode = #tpu.pipeline_mode<synchronous>, transform_indices = @transform_1, window_bounds = array<i64: 128, 128>}, {transform_indices = @transform_2, window_bounds = array<i64: 1, 8, 128>}, {transform_indices = @transform_3, window_bounds = array<i64: 1, 1, 128>}]} {
    %c0 = arith.constant 0 : index
    %c0_0 = arith.constant 0 : index
    %c0_1 = arith.constant 0 : index
    %0 = vector.load %arg1[%c0, %c0_0, %c0_1] : memref<1x8x128xf32, #tpu.memory_space<vmem>>, vector<1x8x128xf32>
    %1 = vector.shape_cast %0 : vector<1x8x128xf32> to vector<8x128xf32>
    %c0_2 = arith.constant 0 : index
    %c0_3 = arith.constant 0 : index
    %2 = vector.load %arg2[%c0_2, %c0_3] : memref<128x128xf32, #tpu.memory_space<vmem>>, vector<128x128xf32>
    %3 = arith.mulf %1, %1 : vector<8x128xf32>
    %cst = arith.constant dense<0.000000e+00> : vector<8xf32>
    %4 = vector.multi_reduction <add>, %3, %cst [1] : vector<8x128xf32> to vector<8xf32>
    %5 = vector.shape_cast %4 : vector<8xf32> to vector<8x1xf32>
    %6 = math.sqrt %5 : vector<8x1xf32>
    %cst_4 = arith.constant 1.000000e-07 : f32
    %7 = vector.broadcast %cst_4 : f32 to vector<8x1xf32>
    %8 = arith.maximumf %6, %7 : vector<8x1xf32>
    %9 = tpu.reciprocal %8 : vector<8x1xf32> -> vector<8x1xf32>
    %10 = vector.broadcast %9 : vector<8x1xf32> to vector<8x128xf32>
    %11 = arith.mulf %1, %10 : vector<8x128xf32>
    %cst_5 = arith.constant dense<0.000000e+00> : vector<8x128xf32>
    %12 = tpu.matmul %11, %2, %cst_5 {dimension_numbers = #tpu.dot_dimension_numbers<[1], [0], [0], [1], [0, 0, 1, 1], [], []>} : vector<8x128xf32>, vector<128x128xf32>, vector<8x128xf32> -> vector<8x128xf32>
    %13 = vector.shape_cast %12 : vector<8x128xf32> to vector<1x8x128xf32>
    %14 = tpu.iota {dimensions = array<i32: 2>} : vector<1x1x128xi32>
    %c16_i32 = arith.constant 16 : i32
    %15 = vector.broadcast %c16_i32 : i32 to vector<1x1x128xi32>
    %16 = arith.cmpi slt, %14, %15 : vector<1x1x128xi32>
    %cst_6 = arith.constant 0.000000e+00 : f32
    %cst_7 = arith.constant -1.000000e+30 : f32
    %17 = vector.broadcast %cst_6 : f32 to vector<1x1x128xf32>
    %18 = vector.broadcast %cst_7 : f32 to vector<1x1x128xf32>
    %19 = arith.select %16, %17, %18 : vector<1x1x128xi1>, vector<1x1x128xf32>
    %cst_8 = arith.constant 8.33333301 : f32
    %20 = vector.broadcast %cst_8 : f32 to vector<1x8x128xf32>
    %21 = arith.mulf %13, %20 : vector<1x8x128xf32>
    %22 = vector.broadcast %19 : vector<1x1x128xf32> to vector<1x8x128xf32>
    %23 = arith.addf %21, %22 : vector<1x8x128xf32>
    %cst_9 = arith.constant dense<0xFF800000> : vector<1x8xf32>
    %24 = vector.multi_reduction <maximumf>, %23, %cst_9 [2] : vector<1x8x128xf32> to vector<1x8xf32>
    %25 = vector.shape_cast %24 : vector<1x8xf32> to vector<1x8x1xf32>
    %26 = vector.broadcast %25 : vector<1x8x1xf32> to vector<1x8x128xf32>
    %27 = arith.subf %23, %26 : vector<1x8x128xf32>
    %28 = math.exp %27 : vector<1x8x128xf32>
    %cst_10 = arith.constant dense<0.000000e+00> : vector<1x8xf32>
    %29 = vector.multi_reduction <add>, %28, %cst_10 [2] : vector<1x8x128xf32> to vector<1x8xf32>
    %30 = vector.shape_cast %29 : vector<1x8xf32> to vector<1x8x1xf32>
    %31 = math.log %30 : vector<1x8x1xf32>
    %32 = arith.addf %31, %25 : vector<1x8x1xf32>
    %cst_11 = arith.constant 1.000000e+01 : f32
    %33 = vector.broadcast %cst_11 : f32 to vector<1x8x128xf32>
    %34 = arith.mulf %13, %33 : vector<1x8x128xf32>
    %cst_12 = arith.constant dense<0xFF800000> : vector<1x128xf32>
    %35 = vector.multi_reduction <maximumf>, %34, %cst_12 [1] : vector<1x8x128xf32> to vector<1x128xf32>
    %36 = vector.shape_cast %35 : vector<1x128xf32> to vector<1x1x128xf32>
    %cst_13 = arith.constant 5.000000e+01 : f32
    %37 = vector.broadcast %cst_13 : f32 to vector<1x1x128xf32>
    %38 = arith.subf %37, %36 : vector<1x1x128xf32>
    %39 = vector.broadcast %38 : vector<1x1x128xf32> to vector<1x8x128xf32>
    %40 = arith.addf %34, %39 : vector<1x8x128xf32>
    %41 = vector.broadcast %19 : vector<1x1x128xf32> to vector<1x8x128xf32>
    %42 = arith.addf %40, %41 : vector<1x8x128xf32>
    %43 = math.exp %42 : vector<1x8x128xf32>
    %cst_14 = arith.constant dense<0.000000e+00> : vector<1x128xf32>
    %44 = vector.multi_reduction <add>, %43, %cst_14 [1] : vector<1x8x128xf32> to vector<1x128xf32>
    %45 = vector.shape_cast %44 : vector<1x128xf32> to vector<1x1x128xf32>
    %cst_15 = arith.constant 9.99999993E-9 : f32
    %46 = vector.broadcast %cst_15 : f32 to vector<1x1x128xf32>
    %47 = arith.addf %45, %46 : vector<1x1x128xf32>
    %48 = tpu.reciprocal %47 : vector<1x1x128xf32> -> vector<1x1x128xf32>
    %49 = vector.broadcast %48 : vector<1x1x128xf32> to vector<1x8x128xf32>
    %50 = arith.mulf %43, %49 : vector<1x8x128xf32>
    %cst_16 = arith.constant dense<0.000000e+00> : vector<1x8xf32>
    %51 = vector.multi_reduction <add>, %50, %cst_16 [2] : vector<1x8x128xf32> to vector<1x8xf32>
    %52 = vector.shape_cast %51 : vector<1x8xf32> to vector<1x8x1xf32>
    %cst_17 = arith.constant 9.99999993E-9 : f32
    %53 = vector.broadcast %cst_17 : f32 to vector<1x8x1xf32>
    %54 = arith.addf %52, %53 : vector<1x8x1xf32>
    %55 = tpu.reciprocal %54 : vector<1x8x1xf32> -> vector<1x8x1xf32>
    %56 = vector.broadcast %55 : vector<1x8x1xf32> to vector<1x8x128xf32>
    %57 = arith.mulf %50, %56 : vector<1x8x128xf32>
    %cst_18 = arith.constant dense<0.000000e+00> : vector<1x128xf32>
    %58 = vector.multi_reduction <add>, %57, %cst_18 [1] : vector<1x8x128xf32> to vector<1x128xf32>
    %59 = vector.shape_cast %58 : vector<1x128xf32> to vector<1x1x128xf32>
    %cst_19 = arith.constant 9.99999993E-9 : f32
    %60 = vector.broadcast %cst_19 : f32 to vector<1x1x128xf32>
    %61 = arith.addf %59, %60 : vector<1x1x128xf32>
    %62 = tpu.reciprocal %61 : vector<1x1x128xf32> -> vector<1x1x128xf32>
    %63 = vector.broadcast %62 : vector<1x1x128xf32> to vector<1x8x128xf32>
    %64 = arith.mulf %57, %63 : vector<1x8x128xf32>
    %cst_20 = arith.constant dense<0.000000e+00> : vector<1x8xf32>
    %65 = vector.multi_reduction <add>, %64, %cst_20 [2] : vector<1x8x128xf32> to vector<1x8xf32>
    %66 = vector.shape_cast %65 : vector<1x8xf32> to vector<1x8x1xf32>
    %cst_21 = arith.constant 9.99999993E-9 : f32
    %67 = vector.broadcast %cst_21 : f32 to vector<1x8x1xf32>
    %68 = arith.addf %66, %67 : vector<1x8x1xf32>
    %69 = tpu.reciprocal %68 : vector<1x8x1xf32> -> vector<1x8x1xf32>
    %70 = vector.broadcast %69 : vector<1x8x1xf32> to vector<1x8x128xf32>
    %71 = arith.mulf %64, %70 : vector<1x8x128xf32>
    %cst_22 = arith.constant dense<0.000000e+00> : vector<1x128xf32>
    %72 = vector.multi_reduction <add>, %71, %cst_22 [1] : vector<1x8x128xf32> to vector<1x128xf32>
    %73 = vector.shape_cast %72 : vector<1x128xf32> to vector<1x1x128xf32>
    %cst_23 = arith.constant 9.99999993E-9 : f32
    %74 = vector.broadcast %cst_23 : f32 to vector<1x1x128xf32>
    %75 = arith.addf %73, %74 : vector<1x1x128xf32>
    %76 = tpu.reciprocal %75 : vector<1x1x128xf32> -> vector<1x1x128xf32>
    %77 = vector.broadcast %76 : vector<1x1x128xf32> to vector<1x8x128xf32>
    %78 = arith.mulf %71, %77 : vector<1x8x128xf32>
    %cst_24 = arith.constant dense<0.000000e+00> : vector<1x8xf32>
    %79 = vector.multi_reduction <add>, %78, %cst_24 [2] : vector<1x8x128xf32> to vector<1x8xf32>
    %80 = vector.shape_cast %79 : vector<1x8xf32> to vector<1x8x1xf32>
    %cst_25 = arith.constant 9.99999993E-9 : f32
    %81 = vector.broadcast %cst_25 : f32 to vector<1x8x1xf32>
    %82 = arith.addf %80, %81 : vector<1x8x1xf32>
    %83 = tpu.reciprocal %82 : vector<1x8x1xf32> -> vector<1x8x1xf32>
    %84 = vector.broadcast %83 : vector<1x8x1xf32> to vector<1x8x128xf32>
    %85 = arith.mulf %78, %84 : vector<1x8x128xf32>
    %c0_26 = arith.constant 0 : index
    %c0_27 = arith.constant 0 : index
    %c0_28 = arith.constant 0 : index
    %86 = vector.load %arg3[%c0_26, %c0_27, %c0_28] : memref<1x8x128xf32, #tpu.memory_space<vmem>>, vector<1x8x128xf32>
    tpu.vector_store %arg3[%c0_26, %c0_27, %c0_28], %85 {strides = array<i32>} : memref<1x8x128xf32, #tpu.memory_space<vmem>>, vector<1x8x128xf32>,
    %cst_29 = arith.constant 8.33333301 : f32
    %87 = vector.broadcast %cst_29 : f32 to vector<1x8x128xf32>
    %88 = arith.mulf %13, %87 : vector<1x8x128xf32>
    %89 = vector.broadcast %32 : vector<1x8x1xf32> to vector<1x8x128xf32>
    %90 = arith.subf %88, %89 : vector<1x8x128xf32>
    %91 = arith.mulf %85, %90 : vector<1x8x128xf32>
    %92 = vector.shape_cast %91 : vector<1x8x128xf32> to vector<1x1x8x128xf32>
    %cst_30 = arith.constant dense<0.000000e+00> : vector<1xf32>
    %93 = vector.multi_reduction <add>, %92, %cst_30 [1, 2, 3] : vector<1x1x8x128xf32> to vector<1xf32>
    %94 = vector.shape_cast %93 : vector<1xf32> to vector<1x1x1x1xf32>
    %95 = vector.extract %94[0, 0, 0, 0] : f32 from vector<1x1x1x1xf32>
    %cst_31 = arith.constant 0.000000e+00 : f32
    %96 = arith.subf %cst_31, %95 : f32
    %97 = vector.broadcast %96 : f32 to vector<1x1x1xf32>
    %98 = vector.shape_cast %97 : vector<1x1x1xf32> to vector<1x1x1xf32>
    %99 = vector.broadcast %98 : vector<1x1x1xf32> to vector<1x1x128xf32>
    %c0_32 = arith.constant 0 : index
    %c0_33 = arith.constant 0 : index
    %c0_34 = arith.constant 0 : index
    %100 = vector.load %arg4[%c0_32, %c0_33, %c0_34] : memref<1x1x128xf32, #tpu.memory_space<vmem>>, vector<1x1x128xf32>
    tpu.vector_store %arg4[%c0_32, %c0_33, %c0_34], %99 {strides = array<i32>} : memref<1x1x128xf32, #tpu.memory_space<vmem>>, vector<1x1x128xf32>,
    return
  }
  func.func @transform_0(%arg0: i32) -> (i32, i32, i32) {
    %c0_i32 = arith.constant 0 : i32
    %c0_i32_0 = arith.constant 0 : i32
    %c0_i32_1 = arith.constant 0 : i32
    return %arg0, %c0_i32, %c0_i32_0 : i32, i32, i32
  }
  func.func @transform_1(%arg0: i32) -> (i32, i32) {
    %c0_i32 = arith.constant 0 : i32
    %c0_i32_0 = arith.constant 0 : i32
    %c0_i32_1 = arith.constant 0 : i32
    return %c0_i32, %c0_i32_0 : i32, i32
  }
  func.func @transform_2(%arg0: i32) -> (i32, i32, i32) {
    %c0_i32 = arith.constant 0 : i32
    %c0_i32_0 = arith.constant 0 : i32
    %c0_i32_1 = arith.constant 0 : i32
    return %arg0, %c0_i32, %c0_i32_0 : i32, i32, i32
  }
  func.func @transform_3(%arg0: i32) -> (i32, i32, i32) {
    %c0_i32 = arith.constant 0 : i32
    %c0_i32_0 = arith.constant 0 : i32
    %c0_i32_1 = arith.constant 0 : i32
    return %arg0, %c0_i32, %c0_i32_0 : i32, i32, i32
  }
}

</mosaic_0001>

<llo_original>
// kernel: tpu_custom_call.1
$region0: #{tpu_custom_call.1}
  #allocation0 [shape = 'u32[]', space=smem, size = 0x4, offset = 0x4, fixed_abs, tag = 'smem constant byte address 0x4 - core index']
  #allocation1 [shape = 'u32[144,128]{1,0:T(1,128)}', space=vmem, size = 0x12000, scoped, tag = 'internal scratch']
  %s0 = inlined_call_operand.hbm [shape: f32[2,8,128], index: 0, kind: input, shape index: {}]
  %s1 = inlined_call_operand.hbm [shape: f32[128,128], index: 1, kind: input, shape index: {}]
  %s2 = inlined_call_operand.hbm [shape: f32[2,8,128], index: 2, kind: output, shape index: {0}]
  %s3 = inlined_call_operand.hbm [shape: f32[2,1,128], index: 3, kind: output, shape index: {1}]
  %4 = xla_tuple %s2, %s3
  %s5 = sld [smem:[#allocation0]]
  $region57: #{tpu_custom_call.1} parent=0
    _
  %s7 = ssub.s32 1, %s5
  %s8 = scalar_select 0, %s7, %s5
  $region1: #{tpu_custom_call.1} parent=0
    #allocation2 [shape = 'u8[8192]{0}', space=vmem, size = 0x2000, scoped, tag = 'input window, operand 0']
    #allocation3 [shape = 's32[2]{0}', space=sflag, size = 0x8, scoped, tag = 'scoped memory for tpu_custom_call.1']
    #allocation4 [shape = 's32[2]{0}', space=sflag, size = 0x8, scoped, tag = 'scoped memory for tpu_custom_call.1']
    #allocation5 [shape = 'u8[65536]{0}', space=vmem, size = 0x10000, scoped, tag = 'input window, operand 1, single buffered']
    #allocation6 [shape = 's32[1]{0}', space=sflag, size = 0x4, scoped, tag = 'scoped memory for tpu_custom_call.1']
    #allocation7 [shape = 'u8[8192]{0}', space=vmem, size = 0x2000, scoped, tag = 'output window, operand 0']
    #allocation8 [shape = 'u8[1024]{0}', space=vmem, size = 0x400, scoped, tag = 'output window, operand 1']
    #allocation9 [shape = 's32[2]{0}', space=sflag, size = 0x8, scoped, tag = 'scoped memory for tpu_custom_call.1']
    %9 = vsyncpa [#allocation3], 0
    %s10 = scalar_lea.sflag [#allocation3], 1
    %11 = vsyncpa %s10, 0
    %12 = vsyncpa [#allocation6], 0
    %13 = vsyncpa [#allocation4], 0
    %s14 = scalar_lea.sflag [#allocation4], 1
    %15 = vsyncpa %s14, 0
    %16 = vsyncpa [#allocation9], 0
    %s17 = scalar_lea.sflag [#allocation9], 1
    %18 = vsyncpa %s17, 0
    loop: start=0, step=1, limit=4
    $region2: #{tpu_custom_call.1} parent=1 // loop_pre_header
      _
    $region3: #{tpu_custom_call.1} parent=1 // loop_header
      %s20 = sphi 0, %s24
      %p21 = scmp.ge.s32.totalorder %s20, 4
      %s30 = sphi 0, %s32
      %s33 = sphi 0, %s30
      %s34 = sphi 0, %s33
      %s50 = sphi 0, %s34
      %s54 = sphi 0, %s54
      %s56 = sphi 0, %s54
      %s57 = sphi 0, %s56
      %s71 = sphi 0, %s57
      %s77 = sphi 0, %s79
      %s80 = sphi 0, %s77
      %s81 = sphi 0, %s80
      %s97 = sphi 0, %s81
      %s103 = sphi 0, %s105
      %s106 = sphi 0, %s103
      %s107 = sphi 0, %s106
      %s123 = sphi 0, %s107
    $region4: #{tpu_custom_call.1} parent=1 // loop_header_branch
      %23 = sbr.rel (%p21) target = $region8
    $region5: #{tpu_custom_call.1} parent=1 // loop_body
      %s25 = ssub.s32 %s20, 1
      %s26 = ssub.s32 %s20, 2
      %s27 = sadd.s32 %s20, 1
      %s28 = ssub.s32 %s20, %s27
      %p29 = scmp.eq.s32.totalorder %s28, 0
      %s31 = sadd.s32 %s30, 1
      %s32 = scalar_select %p29, %s30, %s31
      %p35 = pneg %p29
      %p36 = scmp.eq.s32.totalorder %s20, 1
      %p37 = por %p35, %p36
      %p38 = scmp.ne.s32.totalorder %s30, %s33
      %p39 = scmp.eq.s32.totalorder %s20, 0
      %p40 = por %p38, %p39
      %p41 = scmp.ne.s32.totalorder %s30, %s33
      %p42 = scmp.eq.s32.totalorder %s25, 1
      %p43 = por %p41, %p42
      %p44 = scmp.ne.s32.totalorder %s33, %s34
      %p45 = scmp.eq.s32.totalorder %s25, 0
      %p46 = por %p44, %p45
      %p47 = scmp.ne.s32.totalorder %s33, %s34
      %p48 = scmp.eq.s32.totalorder %s26, 1
      %p49 = por %p47, %p48
      %p51 = scmp.ne.s32.totalorder %s34, %s50
      %p52 = scmp.eq.s32.totalorder %s26, 0
      %p53 = por %p51, %p52
      %s55 = sadd.s32 %s54, 1
      %p58 = scmp.eq.s32.totalorder %s20, 1
      %p59 = scmp.ne.s32.totalorder %s54, %s56
      %p60 = scmp.eq.s32.totalorder %s20, 0
      %p61 = por %p59, %p60
      %p62 = scmp.ne.s32.totalorder %s54, %s56
      %p63 = scmp.eq.s32.totalorder %s25, 1
      %p64 = por %p62, %p63
      %p65 = scmp.ne.s32.totalorder %s56, %s57
      %p66 = scmp.eq.s32.totalorder %s25, 0
      %p67 = por %p65, %p66
      %p68 = scmp.ne.s32.totalorder %s56, %s57
      %p69 = scmp.eq.s32.totalorder %s26, 1
      %p70 = por %p68, %p69
      %p72 = scmp.ne.s32.totalorder %s57, %s71
      %p73 = scmp.eq.s32.totalorder %s26, 0
      %p74 = por %p72, %p73
      %s75 = ssub.s32 %s20, %s27
      %p76 = scmp.eq.s32.totalorder %s75, 0
      %s78 = sadd.s32 %s77, 1
      %s79 = scalar_select %p76, %s77, %s78
      %p82 = pneg %p76
      %p83 = scmp.eq.s32.totalorder %s20, 1
      %p84 = por %p82, %p83
      %p85 = scmp.ne.s32.totalorder %s77, %s80
      %p86 = scmp.eq.s32.totalorder %s20, 0
      %p87 = por %p85, %p86
      %p88 = scmp.ne.s32.totalorder %s77, %s80
      %p89 = scmp.eq.s32.totalorder %s25, 1
      %p90 = por %p88, %p89
      %p91 = scmp.ne.s32.totalorder %s80, %s81
      %p92 = scmp.eq.s32.totalorder %s25, 0
      %p93 = por %p91, %p92
      %p94 = scmp.ne.s32.totalorder %s80, %s81
      %p95 = scmp.eq.s32.totalorder %s26, 1
      %p96 = por %p94, %p95
      %p98 = scmp.ne.s32.totalorder %s81, %s97
      %p99 = scmp.eq.s32.totalorder %s26, 0
      %p100 = por %p98, %p99
      %s101 = ssub.s32 %s20, %s27
      %p102 = scmp.eq.s32.totalorder %s101, 0
      %s104 = sadd.s32 %s103, 1
      %s105 = scalar_select %p102, %s103, %s104
      %p108 = pneg %p102
      %p109 = scmp.eq.s32.totalorder %s20, 1
      %p110 = por %p108, %p109
      %p111 = scmp.ne.s32.totalorder %s103, %s106
      %p112 = scmp.eq.s32.totalorder %s20, 0
      %p113 = por %p111, %p112
      %p114 = scmp.ne.s32.totalorder %s103, %s106
      %p115 = scmp.eq.s32.totalorder %s25, 1
      %p116 = por %p114, %p115
      %p117 = scmp.ne.s32.totalorder %s106, %s107
      %p118 = scmp.eq.s32.totalorder %s25, 0
      %p119 = por %p117, %p118
      %p120 = scmp.ne.s32.totalorder %s106, %s107
      %p121 = scmp.eq.s32.totalorder %s26, 1
      %p122 = por %p120, %p121
      %p124 = scmp.ne.s32.totalorder %s107, %s123
      %p125 = scmp.eq.s32.totalorder %s26, 0
      %p126 = por %p124, %p125
      %p127 = scmp.le.s32.totalorder 1, %s20
      %p128 = scmp.lt.s32.totalorder %s20, 3
      %p129 = pnand %p127, %p128
      %p130 = pneg %p129
      // Predicated region
      $region9: #{tpu_custom_call.1} parent=5 // pred_check
        _
      $region10: #{tpu_custom_call.1} parent=5 // pred_check_branch
        %132 = sbr.rel (%p129) target = $region12
      $region11: #{tpu_custom_call.1} parent=5 // pred_region
        %s133 = ssub.s32 %s20, 1
        // Predicated region
        $region13: #{tpu_custom_call.1} parent=11 // pred_check
          %p134 = pneg %p67
        $region14: #{tpu_custom_call.1} parent=11 // pred_check_branch
          %136 = sbr.rel (%p134) target = $region16
        $region15: #{tpu_custom_call.1} parent=11 // pred_region
          %s138 = ssub.s32 2048, 2048
          %139 = vsyncadd [#allocation6], %s138
          %s140 = sshll.u32 [#allocation5], 4
          %s141 = int_to_ptr.vmem [resolvable:$true] %s140
          %146 = dma.hbm_to_vmem [thread:$0]  %s1, 2048, %s141, [#allocation6], 128, 128, 8
        $region16: #{tpu_custom_call.1} parent=11 // pred_fallthru
          _
      $region12: #{tpu_custom_call.1} parent=5 // pred_fallthru
        _
      %p147 = scmp.lt.s32.totalorder %s20, 2
      // Predicated region
      $region17: #{tpu_custom_call.1} parent=5 // pred_check
        %p148 = pneg %p147
      $region18: #{tpu_custom_call.1} parent=5 // pred_check_branch
        %150 = sbr.rel (%p148) target = $region20
      $region19: #{tpu_custom_call.1} parent=5 // pred_region
        // Predicated region
        $region21: #{tpu_custom_call.1} parent=19 // pred_check
          %p151 = pneg %p40
        $region22: #{tpu_custom_call.1} parent=19 // pred_check_branch
          %153 = sbr.rel (%p151) target = $region24
        $region23: #{tpu_custom_call.1} parent=19 // pred_region
          %s154 = sand.u32 %s30, 1
          %s155 = scalar_lea.sflag [#allocation3], %s154
          %s156 = sand.u32 %s30, 1
          %s157 = smul.addr %s156, 8
          %s158 = scalar_lea.vmem [#allocation2], %s157
          %s160 = ssub.s32 128, 128
          %161 = vsyncadd %s155, %s160
          %s162 = smul.addr %s20, 128
          %s163 = scalar_lea.hbm %s0, %s162
          %s165 = sshll.u32 %s158, 4
          %s166 = int_to_ptr.vmem [resolvable:$true] %s165
          %168 = dma.hbm_to_vmem [thread:$0]  %s163, 128, %s166, %s155
        $region24: #{tpu_custom_call.1} parent=19 // pred_fallthru
          _
      $region20: #{tpu_custom_call.1} parent=5 // pred_fallthru
        _
      %p169 = scmp.le.s32.totalorder 1, %s20
      %p170 = scmp.lt.s32.totalorder %s20, 3
      %p171 = pnand %p169, %p170
      %p172 = pneg %p171
      // Predicated region
      $region25: #{tpu_custom_call.1} parent=5 // pred_check
        _
      $region26: #{tpu_custom_call.1} parent=5 // pred_check_branch
        %174 = sbr.rel (%p171) target = $region28
      $region27: #{tpu_custom_call.1} parent=5 // pred_region
        %s175 = ssub.s32 %s20, 1
        %s176 = sand.u32 %s33, 1
        %s177 = scalar_lea.sflag [#allocation3], %s176
        %s178 = sand.u32 %s33, 1
        %s179 = smul.addr %s178, 8
        %s180 = scalar_lea.vmem [#allocation2], %s179
        // Predicated region
        $region29: #{tpu_custom_call.1} parent=27 // pred_check
          %p181 = pneg %p46
        $region30: #{tpu_custom_call.1} parent=27 // pred_check_branch
          %183 = sbr.rel (%p181) target = $region32
        $region31: #{tpu_custom_call.1} parent=27 // pred_region
          %184 = dma.done %s177, 128
        $region32: #{tpu_custom_call.1} parent=27 // pred_fallthru
          _
        // Predicated region
        $region33: #{tpu_custom_call.1} parent=27 // pred_check
          %p185 = pneg %p67
        $region34: #{tpu_custom_call.1} parent=27 // pred_check_branch
          %187 = sbr.rel (%p185) target = $region36
        $region35: #{tpu_custom_call.1} parent=27 // pred_region
          %188 = dma.done [#allocation6], 2048
        $region36: #{tpu_custom_call.1} parent=27 // pred_fallthru
          _
        %s189 = sand.u32 %s33, 1
        %s190 = scalar_lea.sflag [#allocation3], %s189
        %s191 = sand.u32 %s33, 1
        %s192 = smul.addr %s191, 8
        %s193 = scalar_lea.vmem [#allocation2], %s192
        %p194 = pneg %p46
        %p195 = pneg %p43
        %p196 = pneg %p67
        %p197 = pneg %p64
        %p198 = pneg %p93
        %p199 = pneg %p90
        %s200 = sand.u32 %s80, 1
        %s201 = scalar_lea.sflag [#allocation4], %s200
        %s202 = sand.u32 %s80, 1
        %s203 = smul.addr %s202, 8
        %s204 = scalar_lea.vmem [#allocation7], %s203
        %p205 = pneg %p119
        %p206 = pneg %p116
        %s207 = sand.u32 %s106, 1
        %s208 = scalar_lea.sflag [#allocation9], %s207
        %s209 = sand.u32 %s106, 1
        %s210 = scalar_lea.vmem [#allocation8], %s209
        %v211 = vld [vmem:[%s180] sm:$0xff]
        %v212 = vld [vmem:[#allocation5] sm:$0xff]
        %v213 = vld [vmem:[#allocation5 + $0x8] sm:$0xff]
        %v214 = vld [vmem:[#allocation5 + $0x10] sm:$0xff]
        %v215 = vld [vmem:[#allocation5 + $0x18] sm:$0xff]
        %v216 = vld [vmem:[#allocation5 + $0x20] sm:$0xff]
        %v217 = vld [vmem:[#allocation5 + $0x28] sm:$0xff]
        %v218 = vld [vmem:[#allocation5 + $0x30] sm:$0xff]
        %v219 = vld [vmem:[#allocation5 + $0x38] sm:$0xff]
        %v220 = vld [vmem:[#allocation5 + $0x40] sm:$0xff]
        %v221 = vld [vmem:[#allocation5 + $0x48] sm:$0xff]
        %v222 = vld [vmem:[#allocation5 + $0x50] sm:$0xff]
        %v223 = vld [vmem:[#allocation5 + $0x58] sm:$0xff]
        %v224 = vld [vmem:[#allocation5 + $0x60] sm:$0xff]
        %v225 = vld [vmem:[#allocation5 + $0x68] sm:$0xff]
        %v226 = vld [vmem:[#allocation5 + $0x70] sm:$0xff]
        %v227 = vld [vmem:[#allocation5 + $0x78] sm:$0xff]
        %v228 = vmul.f32 %v211, %v211
        %229 = vadd.xlane.f32.xlu0 %v228
        %v230 = vpop.xlane.xlu0 %229
        %v231 = vrsqrt.pop %v230
        %v232 = vmul.f32 %v230, %v231
        %vm233 = vcmp.eq.f32.partialorder %v230, inf
        %v234 = vsel %vm233, %v230, %v232
        %vm235 = vcmp.eq.f32.partialorder %v230, 0.0
        %v236 = vand.u32 %v230, 2147483648
        %v237 = vsel %vm235, %v236, %v234
        %v238 = vmax.f32 %v237, 1e-07
        %v239 = vrcp.pop %v238
        %v240 = vmul.f32 %v211, %v239
        %241 = vmatprep.subr.mxu0 0.0
        %242 = vmatpush1.msra.mxu0 %v212
        %243 = vmatprep.subr.mxu0 0.0
        %244 = vmatpush1.msra.mxu0 %v213
        %245 = vmatprep.subr.mxu0 0.0
        %246 = vmatpush1.msra.mxu0 %v214
        %247 = vmatprep.subr.mxu0 0.0
        %248 = vmatpush1.msra.mxu0 %v215
        %249 = vmatprep.subr.mxu0 0.0
        %250 = vmatpush1.msra.mxu0 %v216
        %251 = vmatprep.subr.mxu0 0.0
        %252 = vmatpush1.msra.mxu0 %v217
        %253 = vmatprep.subr.mxu0 0.0
        %254 = vmatpush1.msra.mxu0 %v218
        %255 = vmatprep.subr.mxu0 0.0
        %256 = vmatpush1.msra.mxu0 %v219
        %257 = vmatprep.subr.mxu0 0.0
        %258 = vmatpush1.msra.mxu0 %v220
        %259 = vmatprep.subr.mxu0 0.0
        %260 = vmatpush1.msra.mxu0 %v221
        %261 = vmatprep.subr.mxu0 0.0
        %262 = vmatpush1.msra.mxu0 %v222
        %263 = vmatprep.subr.mxu0 0.0
        %264 = vmatpush1.msra.mxu0 %v223
        %265 = vmatprep.subr.mxu0 0.0
        %266 = vmatpush1.msra.mxu0 %v224
        %267 = vmatprep.subr.mxu0 0.0
        %268 = vmatpush1.msra.mxu0 %v225
        %269 = vmatprep.subr.mxu0 0.0
        %270 = vmatpush1.msra.mxu0 %v226
        %271 = vmatprep.subr.mxu0 0.0
        %272 = vmatpush1.msra.mxu0 %v227
        %273 = vmatprep.subr.mxu0 0.0
        %274 = vmatpush1.msra.mxu0 0.0
        %275 = vmatprep.subr.mxu0 0.0
        %276 = vmatpush1.msra.mxu0 0.0
        %277 = vmatprep.subr.mxu0 0.0
        %278 = vmatpush1.msra.mxu0 0.0
        %279 = vmatprep.subr.mxu0 0.0
        %280 = vmatpush1.msra.mxu0 0.0
        %281 = vmatprep.subr.mxu0 0.0
        %282 = vmatpush1.msra.mxu0 0.0
        %283 = vmatprep.subr.mxu0 0.0
        %284 = vmatpush1.msra.mxu0 0.0
        %285 = vmatprep.subr.mxu0 0.0
        %286 = vmatpush1.msra.mxu0 0.0
        %287 = vmatprep.subr.mxu0 0.0
        %288 = vmatpush1.msra.mxu0 0.0
        %289 = vmatprep.subr.mxu0 0.0
        %290 = vmatpush1.msra.mxu0 0.0
        %291 = vmatprep.subr.mxu0 0.0
        %292 = vmatpush1.msra.mxu0 0.0
        %293 = vmatprep.subr.mxu0 0.0
        %294 = vmatpush1.msra.mxu0 0.0
        %295 = vmatprep.subr.mxu0 0.0
        %296 = vmatpush1.msra.mxu0 0.0
        %297 = vmatprep.subr.mxu0 0.0
        %298 = vmatpush1.msra.mxu0 0.0
        %299 = vmatprep.subr.mxu0 0.0
        %300 = vmatpush1.msra.mxu0 0.0
        %301 = vmatprep.subr.mxu0 0.0
        %302 = vmatpush1.msra.mxu0 0.0
        %303 = vmatprep.subr.mxu0 0.0
        %304 = vmatpush1.msra.mxu0 0.0
        %305 = vmatprep.mubr.f32.mxu0 0.0
        %306 = vmatmul.mubr.f32.gmra.mrb[0].mxu0 %v240
        %v307 = vpop.f32.mrb[0].mxu0
        %v308 = vadd.f32 0.0, %v307
        %v309 = vpop.f32.mrb[0].mxu0
        %310 = vdwg.mxu0
        %v311 = vlaneseq
        %v312 = vand.u32 %v311, 127
        %vm313 = vcmp.lt.s32.totalorder %v312, 16
        %v314 = vsel %vm313, 0.0, -1e+30
        %v315 = vmul.f32 %v308, 8.333333
        %v316 = vadd.f32 %v315, %v314
        %317 = vmax.xlane.f32.xlu0 %v316
        %v318 = vpop.xlane.xlu0 %317
        %v319 = vsub.f32 %v316, %v318
        %v320 = vmul.f32 %v319, 1.442695
        %v321 = vpow.pop %v320
        %322 = vadd.xlane.f32.xlu0 %v321
        %v323 = vpop.xlane.xlu0 %322
        %v324 = vlog2.pop %v323
        %v325 = vmul.f32 %v324, 0.6931472
        %v326 = vadd.f32 %v325, %v318
        %v327 = vmul.f32 %v308, 10.0
        %v328 = vrot.slane %v327, 4
        %v329 = vmax.f32 %v327, %v328
        %v330 = vrot.slane %v329, 2
        %v331 = vmax.f32 %v329, %v330
        %v332 = vrot.slane %v331, 1
        %v333 = vmax.f32 %v331, %v332
        %v334 = vsub.f32 50.0, %v333
        %v335 = vadd.f32 %v327, %v334
        %v336 = vadd.f32 %v335, %v314
        %v337 = vmul.f32 %v336, 1.442695
        %v338 = vpow.pop %v337
        %v339 = vrot.slane %v338, 4
        %v340 = vadd.f32 %v338, %v339
        %v341 = vrot.slane %v340, 2
        %v342 = vadd.f32 %v340, %v341
        %v343 = vrot.slane %v342, 1
        %v344 = vadd.f32 %v342, %v343
        %v345 = vadd.f32 %v344, 1e-08
        %v346 = vrcp.pop %v345
        %v347 = vmul.f32 %v338, %v346
        %348 = vadd.xlane.f32.xlu0 %v347
        %v349 = vpop.xlane.xlu0 %348
        %v350 = vadd.f32 %v349, 1e-08
        %v351 = vrcp.pop %v350
        %v352 = vmul.f32 %v347, %v351
        %v353 = vrot.slane %v352, 4
        %v354 = vadd.f32 %v352, %v353
        %v355 = vrot.slane %v354, 2
        %v356 = vadd.f32 %v354, %v355
        %v357 = vrot.slane %v356, 1
        %v358 = vadd.f32 %v356, %v357
        %v359 = vadd.f32 %v358, 1e-08
        %v360 = vrcp.pop %v359
        %v361 = vmul.f32 %v352, %v360
        %362 = vadd.xlane.f32.xlu0 %v361
        %v363 = vpop.xlane.xlu0 %362
        %v364 = vadd.f32 %v363, 1e-08
        %v365 = vrcp.pop %v364
        %v366 = vmul.f32 %v361, %v365
        %v367 = vrot.slane %v366, 4
        %v368 = vadd.f32 %v366, %v367
        %v369 = vrot.slane %v368, 2
        %v370 = vadd.f32 %v368, %v369
        %v371 = vrot.slane %v370, 1
        %v372 = vadd.f32 %v370, %v371
        %v373 = vadd.f32 %v372, 1e-08
        %v374 = vrcp.pop %v373
        %v375 = vmul.f32 %v366, %v374
        %376 = vadd.xlane.f32.xlu0 %v375
        %v377 = vpop.xlane.xlu0 %376
        %v378 = vadd.f32 %v377, 1e-08
        %v379 = vrcp.pop %v378
        %v380 = vmul.f32 %v375, %v379
        %381 = vst [vmem:[%s204] sm:$0xff] %v380
        %v382 = vsub.f32 %v315, %v326
        %v383 = vmul.f32 %v380, %v382
        %384 = vadd.xlane.f32.xlu0 %v383
        %v385 = vpop.xlane.xlu0 %384
        %v386 = vrot.slane %v385, 4
        %v387 = vadd.f32 %v385, %v386
        %v388 = vrot.slane %v387, 2
        %v389 = vadd.f32 %v387, %v388
        %v390 = vrot.slane %v389, 1
        %v391 = vadd.f32 %v389, %v390
        %s392 = vtos %v391
        %s393 = ssub.f32 0.0, %s392
        %v394 = vstv %s393
        %395 = vst [vmem:[%s210] sm:$0x1] %v394
        %s396 = sand.u32 %s80, 1
        %s397 = scalar_lea.sflag [#allocation4], %s396
        %s398 = sand.u32 %s80, 1
        %s399 = smul.addr %s398, 8
        %s400 = scalar_lea.vmem [#allocation7], %s399
        %s401 = sand.u32 %s106, 1
        %s402 = scalar_lea.sflag [#allocation9], %s401
        %s403 = sand.u32 %s106, 1
        %s404 = scalar_lea.vmem [#allocation8], %s403
        // Predicated region
        $region37: #{tpu_custom_call.1} parent=27 // pred_check
          %p405 = pneg %p90
        $region38: #{tpu_custom_call.1} parent=27 // pred_check_branch
          %407 = sbr.rel (%p405) target = $region40
        $region39: #{tpu_custom_call.1} parent=27 // pred_region
          %s409 = ssub.s32 128, 128
          %410 = vsyncadd %s397, %s409
          %s411 = smul.addr %s25, 128
          %s412 = scalar_lea.hbm %s2, %s411
          %s414 = sshll.u32 %s400, 4
          %s415 = int_to_ptr.vmem [resolvable:$true] %s414
          %417 = dma.vmem_to_hbm [thread:$0]  %s415, 128, %s412, %s397
        $region40: #{tpu_custom_call.1} parent=27 // pred_fallthru
          _
        // Predicated region
        $region41: #{tpu_custom_call.1} parent=27 // pred_check
          %p418 = pneg %p116
        $region42: #{tpu_custom_call.1} parent=27 // pred_check_branch
          %420 = sbr.rel (%p418) target = $region44
        $region43: #{tpu_custom_call.1} parent=27 // pred_region
          %s422 = ssub.s32 16, 16
          %423 = vsyncadd %s402, %s422
          %s424 = smul.addr %s25, 16
          %s425 = scalar_lea.hbm %s3, %s424
          %s427 = sshll.u32 %s404, 4
          %s428 = int_to_ptr.vmem [resolvable:$true] %s427
          %430 = dma.vmem_to_hbm [thread:$0]  %s428, 16, %s425, %s402
        $region44: #{tpu_custom_call.1} parent=27 // pred_fallthru
          _
      $region28: #{tpu_custom_call.1} parent=5 // pred_fallthru
        _
      %p431 = scmp.le.s32.totalorder 2, %s20
      // Predicated region
      $region45: #{tpu_custom_call.1} parent=5 // pred_check
        %p432 = pneg %p431
      $region46: #{tpu_custom_call.1} parent=5 // pred_check_branch
        %434 = sbr.rel (%p432) target = $region48
      $region47: #{tpu_custom_call.1} parent=5 // pred_region
        %s435 = ssub.s32 %s20, 2
        // Predicated region
        $region49: #{tpu_custom_call.1} parent=47 // pred_check
          %p436 = pneg %p96
        $region50: #{tpu_custom_call.1} parent=47 // pred_check_branch
          %438 = sbr.rel (%p436) target = $region52
        $region51: #{tpu_custom_call.1} parent=47 // pred_region
          %s439 = sand.u32 %s81, 1
          %s440 = scalar_lea.sflag [#allocation4], %s439
          %s441 = sand.u32 %s81, 1
          %s442 = smul.addr %s441, 8
          %s443 = scalar_lea.vmem [#allocation7], %s442
          %444 = dma.done %s440, 128
        $region52: #{tpu_custom_call.1} parent=47 // pred_fallthru
          _
        // Predicated region
        $region53: #{tpu_custom_call.1} parent=47 // pred_check
          %p445 = pneg %p122
        $region54: #{tpu_custom_call.1} parent=47 // pred_check_branch
          %447 = sbr.rel (%p445) target = $region56
        $region55: #{tpu_custom_call.1} parent=47 // pred_region
          %s448 = sand.u32 %s107, 1
          %s449 = scalar_lea.sflag [#allocation9], %s448
          %s450 = sand.u32 %s107, 1
          %s451 = scalar_lea.vmem [#allocation8], %s450
          %452 = dma.done %s449, 16
        $region56: #{tpu_custom_call.1} parent=47 // pred_fallthru
          _
      $region48: #{tpu_custom_call.1} parent=5 // pred_fallthru
        _
    $region6: #{tpu_custom_call.1} parent=1 // loop_footer
      %s24 = sadd.s32 1, %s20
    $region7: #{tpu_custom_call.1} parent=1 // loop_footer_branch
      %19 = sbr.rel target = $region3
    $region8: #{tpu_custom_call.1} parent=1 // loop_exit
      _
    %453 = vsyncpa [#allocation3], 1
    %s454 = scalar_lea.sflag [#allocation3], 1
    %455 = vsyncpa %s454, 1
    %456 = vsyncpa [#allocation6], 1
    %457 = vsyncpa [#allocation4], 1
    %s458 = scalar_lea.sflag [#allocation4], 1
    %459 = vsyncpa %s458, 1
    %460 = vsyncpa [#allocation9], 1
    %s461 = scalar_lea.sflag [#allocation9], 1
    %462 = vsyncpa %s461, 1

// kernel: tpu_custom_call.1
$region0: #{tpu_custom_call.1}
  #allocation0 [shape = 'u32[]', space=smem, size = 0x4, offset = 0x4, fixed_abs, tag = 'smem constant byte address 0x4 - core index']
  #allocation1 [shape = 'u32[144,128]{1,0:T(1,128)}', space=vmem, size = 0x12000, scoped, tag = 'internal scratch']
  %s0 = inlined_call_operand.hbm [shape: f32[2,8,128], index: 0, kind: input, shape index: {}]
  %s1 = inlined_call_operand.hbm [shape: f32[128,128], index: 1, kind: input, shape index: {}]
  %s2 = inlined_call_operand.hbm [shape: f32[2,8,128], index: 2, kind: output, shape index: {0}]
  %s3 = inlined_call_operand.hbm [shape: f32[2,1,128], index: 3, kind: output, shape index: {1}]
  %4 = xla_tuple %s2, %s3
  %s5 = sld [smem:[#allocation0]]
  $region57: #{tpu_custom_call.1} parent=0
    _
  %s7 = ssub.s32 1, %s5
  %s8 = scalar_select 0, %s7, %s5
  $region1: #{tpu_custom_call.1} parent=0
    #allocation2 [shape = 'u8[8192]{0}', space=vmem, size = 0x2000, scoped, tag = 'input window, operand 0']
    #allocation3 [shape = 's32[2]{0}', space=sflag, size = 0x8, scoped, tag = 'scoped memory for tpu_custom_call.1']
    #allocation4 [shape = 's32[2]{0}', space=sflag, size = 0x8, scoped, tag = 'scoped memory for tpu_custom_call.1']
    #allocation5 [shape = 'u8[65536]{0}', space=vmem, size = 0x10000, scoped, tag = 'input window, operand 1, single buffered']
    #allocation6 [shape = 's32[1]{0}', space=sflag, size = 0x4, scoped, tag = 'scoped memory for tpu_custom_call.1']
    #allocation7 [shape = 'u8[8192]{0}', space=vmem, size = 0x2000, scoped, tag = 'output window, operand 0']
    #allocation8 [shape = 'u8[1024]{0}', space=vmem, size = 0x400, scoped, tag = 'output window, operand 1']
    #allocation9 [shape = 's32[2]{0}', space=sflag, size = 0x8, scoped, tag = 'scoped memory for tpu_custom_call.1']
    %9 = vsyncpa [#allocation3], 0
    %s10 = scalar_lea.sflag [#allocation3], 1
    %11 = vsyncpa %s10, 0
    %12 = vsyncpa [#allocation6], 0
    %13 = vsyncpa [#allocation4], 0
    %s14 = scalar_lea.sflag [#allocation4], 1
    %15 = vsyncpa %s14, 0
    %16 = vsyncpa [#allocation9], 0
    %s17 = scalar_lea.sflag [#allocation9], 1
    %18 = vsyncpa %s17, 0
    loop: start=0, step=1, limit=4
    $region2: #{tpu_custom_call.1} parent=1 // loop_pre_header
      _
    $region3: #{tpu_custom_call.1} parent=1 // loop_header
      %s20 = sphi 0, %s24
      %p21 = scmp.ge.s32.totalorder %s20, 4
      %s30 = sphi 0, %s32
      %s33 = sphi 0, %s30
      %s34 = sphi 0, %s33
      %s50 = sphi 0, %s34
      %s54 = sphi 0, %s54
      %s56 = sphi 0, %s54
      %s57 = sphi 0, %s56
      %s71 = sphi 0, %s57
      %s77 = sphi 0, %s79
      %s80 = sphi 0, %s77
      %s81 = sphi 0, %s80
      %s97 = sphi 0, %s81
      %s103 = sphi 0, %s105
      %s106 = sphi 0, %s103
      %s107 = sphi 0, %s106
      %s123 = sphi 0, %s107
    $region4: #{tpu_custom_call.1} parent=1 // loop_header_branch
      %23 = sbr.rel (%p21) target = $region8
    $region5: #{tpu_custom_call.1} parent=1 // loop_body
      %s25 = ssub.s32 %s20, 1
      %s26 = ssub.s32 %s20, 2
      %s27 = sadd.s32 %s20, 1
      %s28 = ssub.s32 %s20, %s27
      %p29 = scmp.eq.s32.totalorder %s28, 0
      %s31 = sadd.s32 %s30, 1
      %s32 = scalar_select %p29, %s30, %s31
      %p35 = pneg %p29
      %p36 = scmp.eq.s32.totalorder %s20, 1
      %p37 = por %p35, %p36
      %p38 = scmp.ne.s32.totalorder %s30, %s33
      %p39 = scmp.eq.s32.totalorder %s20, 0
      %p40 = por %p38, %p39
      %p41 = scmp.ne.s32.totalorder %s30, %s33
      %p42 = scmp.eq.s32.totalorder %s25, 1
      %p43 = por %p41, %p42
      %p44 = scmp.ne.s32.totalorder %s33, %s34
      %p45 = scmp.eq.s32.totalorder %s25, 0
      %p46 = por %p44, %p45
      %p47 = scmp.ne.s32.totalorder %s33, %s34
      %p48 = scmp.eq.s32.totalorder %s26, 1
      %p49 = por %p47, %p48
      %p51 = scmp.ne.s32.totalorder %s34, %s50
      %p52 = scmp.eq.s32.totalorder %s26, 0
      %p53 = por %p51, %p52
      %s55 = sadd.s32 %s54, 1
      %p58 = scmp.eq.s32.totalorder %s20, 1
      %p59 = scmp.ne.s32.totalorder %s54, %s56
      %p60 = scmp.eq.s32.totalorder %s20, 0
      %p61 = por %p59, %p60
      %p62 = scmp.ne.s32.totalorder %s54, %s56
      %p63 = scmp.eq.s32.totalorder %s25, 1
      %p64 = por %p62, %p63
      %p65 = scmp.ne.s32.totalorder %s56, %s57
      %p66 = scmp.eq.s32.totalorder %s25, 0
      %p67 = por %p65, %p66
      %p68 = scmp.ne.s32.totalorder %s56, %s57
      %p69 = scmp.eq.s32.totalorder %s26, 1
      %p70 = por %p68, %p69
      %p72 = scmp.ne.s32.totalorder %s57, %s71
      %p73 = scmp.eq.s32.totalorder %s26, 0
      %p74 = por %p72, %p73
      %s75 = ssub.s32 %s20, %s27
      %p76 = scmp.eq.s32.totalorder %s75, 0
      %s78 = sadd.s32 %s77, 1
      %s79 = scalar_select %p76, %s77, %s78
      %p82 = pneg %p76
      %p83 = scmp.eq.s32.totalorder %s20, 1
      %p84 = por %p82, %p83
      %p85 = scmp.ne.s32.totalorder %s77, %s80
      %p86 = scmp.eq.s32.totalorder %s20, 0
      %p87 = por %p85, %p86
      %p88 = scmp.ne.s32.totalorder %s77, %s80
      %p89 = scmp.eq.s32.totalorder %s25, 1
      %p90 = por %p88, %p89
      %p91 = scmp.ne.s32.totalorder %s80, %s81
      %p92 = scmp.eq.s32.totalorder %s25, 0
      %p93 = por %p91, %p92
      %p94 = scmp.ne.s32.totalorder %s80, %s81
      %p95 = scmp.eq.s32.totalorder %s26, 1
      %p96 = por %p94, %p95
      %p98 = scmp.ne.s32.totalorder %s81, %s97
      %p99 = scmp.eq.s32.totalorder %s26, 0
      %p100 = por %p98, %p99
      %s101 = ssub.s32 %s20, %s27
      %p102 = scmp.eq.s32.totalorder %s101, 0
      %s104 = sadd.s32 %s103, 1
      %s105 = scalar_select %p102, %s103, %s104
      %p108 = pneg %p102
      %p109 = scmp.eq.s32.totalorder %s20, 1
      %p110 = por %p108, %p109
      %p111 = scmp.ne.s32.totalorder %s103, %s106
      %p112 = scmp.eq.s32.totalorder %s20, 0
      %p113 = por %p111, %p112
      %p114 = scmp.ne.s32.totalorder %s103, %s106
      %p115 = scmp.eq.s32.totalorder %s25, 1
      %p116 = por %p114, %p115
      %p117 = scmp.ne.s32.totalorder %s106, %s107
      %p118 = scmp.eq.s32.totalorder %s25, 0
      %p119 = por %p117, %p118
      %p120 = scmp.ne.s32.totalorder %s106, %s107
      %p121 = scmp.eq.s32.totalorder %s26, 1
      %p122 = por %p120, %p121
      %p124 = scmp.ne.s32.totalorder %s107, %s123
      %p125 = scmp.eq.s32.totalorder %s26, 0
      %p126 = por %p124, %p125
      %p127 = scmp.le.s32.totalorder 1, %s20
      %p128 = scmp.lt.s32.totalorder %s20, 3
      %p129 = pnand %p127, %p128
      %p130 = pneg %p129
      // Predicated region
      $region9: #{tpu_custom_call.1} parent=5 // pred_check
        _
      $region10: #{tpu_custom_call.1} parent=5 // pred_check_branch
        %132 = sbr.rel (%p129) target = $region12
      $region11: #{tpu_custom_call.1} parent=5 // pred_region
        %s133 = ssub.s32 %s20, 1
        // Predicated region
        $region13: #{tpu_custom_call.1} parent=11 // pred_check
          %p134 = pneg %p67
        $region14: #{tpu_custom_call.1} parent=11 // pred_check_branch
          %136 = sbr.rel (%p134) target = $region16
        $region15: #{tpu_custom_call.1} parent=11 // pred_region
          %s138 = ssub.s32 2048, 2048
          %139 = vsyncadd [#allocation6], %s138
          %s140 = sshll.u32 [#allocation5], 4
          %s141 = int_to_ptr.vmem [resolvable:$true] %s140
          %146 = dma.hbm_to_vmem [thread:$0]  %s1, 2048, %s141, [#allocation6], 128, 128, 8
        $region16: #{tpu_custom_call.1} parent=11 // pred_fallthru
          _
      $region12: #{tpu_custom_call.1} parent=5 // pred_fallthru
        _
      %p147 = scmp.lt.s32.totalorder %s20, 2
      // Predicated region
      $region17: #{tpu_custom_call.1} parent=5 // pred_check
        %p148 = pneg %p147
      $region18: #{tpu_custom_call.1} parent=5 // pred_check_branch
        %150 = sbr.rel (%p148) target = $region20
      $region19: #{tpu_custom_call.1} parent=5 // pred_region
        // Predicated region
        $region21: #{tpu_custom_call.1} parent=19 // pred_check
          %p151 = pneg %p40
        $region22: #{tpu_custom_call.1} parent=19 // pred_check_branch
          %153 = sbr.rel (%p151) target = $region24
        $region23: #{tpu_custom_call.1} parent=19 // pred_region
          %s154 = sand.u32 %s30, 1
          %s155 = scalar_lea.sflag [#allocation3], %s154
          %s156 = sand.u32 %s30, 1
          %s157 = smul.addr %s156, 8
          %s158 = scalar_lea.vmem [#allocation2], %s157
          %s160 = ssub.s32 128, 128
          %161 = vsyncadd %s155, %s160
          %s162 = smul.addr %s20, 128
          %s163 = scalar_lea.hbm %s0, %s162
          %s165 = sshll.u32 %s158, 4
          %s166 = int_to_ptr.vmem [resolvable:$true] %s165
          %168 = dma.hbm_to_vmem [thread:$0]  %s163, 128, %s166, %s155
        $region24: #{tpu_custom_call.1} parent=19 // pred_fallthru
          _
      $region20: #{tpu_custom_call.1} parent=5 // pred_fallthru
        _
      %p169 = scmp.le.s32.totalorder 1, %s20
      %p170 = scmp.lt.s32.totalorder %s20, 3
      %p171 = pnand %p169, %p170
      %p172 = pneg %p171
      // Predicated region
      $region25: #{tpu_custom_call.1} parent=5 // pred_check
        _
      $region26: #{tpu_custom_call.1} parent=5 // pred_check_branch
        %174 = sbr.rel (%p171) target = $region28
      $region27: #{tpu_custom_call.1} parent=5 // pred_region
        %s175 = ssub.s32 %s20, 1
        %s176 = sand.u32 %s33, 1
        %s177 = scalar_lea.sflag [#allocation3], %s176
        %s178 = sand.u32 %s33, 1
        %s179 = smul.addr %s178, 8
        %s180 = scalar_lea.vmem [#allocation2], %s179
        // Predicated region
        $region29: #{tpu_custom_call.1} parent=27 // pred_check
          %p181 = pneg %p46
        $region30: #{tpu_custom_call.1} parent=27 // pred_check_branch
          %183 = sbr.rel (%p181) target = $region32
        $region31: #{tpu_custom_call.1} parent=27 // pred_region
          %184 = dma.done %s177, 128
        $region32: #{tpu_custom_call.1} parent=27 // pred_fallthru
          _
        // Predicated region
        $region33: #{tpu_custom_call.1} parent=27 // pred_check
          %p185 = pneg %p67
        $region34: #{tpu_custom_call.1} parent=27 // pred_check_branch
          %187 = sbr.rel (%p185) target = $region36
        $region35: #{tpu_custom_call.1} parent=27 // pred_region
          %188 = dma.done [#allocation6], 2048
        $region36: #{tpu_custom_call.1} parent=27 // pred_fallthru
          _
        %s189 = sand.u32 %s33, 1
        %s190 = scalar_lea.sflag [#allocation3], %s189
        %s191 = sand.u32 %s33, 1
        %s192 = smul.addr %s191, 8
        %s193 = scalar_lea.vmem [#allocation2], %s192
        %p194 = pneg %p46
        %p195 = pneg %p43
        %p196 = pneg %p67
        %p197 = pneg %p64
        %p198 = pneg %p93
        %p199 = pneg %p90
        %s200 = sand.u32 %s80, 1
        %s201 = scalar_lea.sflag [#allocation4], %s200
        %s202 = sand.u32 %s80, 1
        %s203 = smul.addr %s202, 8
        %s204 = scalar_lea.vmem [#allocation7], %s203
        %p205 = pneg %p119
        %p206 = pneg %p116
        %s207 = sand.u32 %s106, 1
        %s208 = scalar_lea.sflag [#allocation9], %s207
        %s209 = sand.u32 %s106, 1
        %s210 = scalar_lea.vmem [#allocation8], %s209
        %v211 = vld [vmem:[%s180] sm:$0xff]
        %v212 = vld [vmem:[#allocation5] sm:$0xff]
        %v213 = vld [vmem:[#allocation5 + $0x8] sm:$0xff]
        %v214 = vld [vmem:[#allocation5 + $0x10] sm:$0xff]
        %v215 = vld [vmem:[#allocation5 + $0x18] sm:$0xff]
        %v216 = vld [vmem:[#allocation5 + $0x20] sm:$0xff]
        %v217 = vld [vmem:[#allocation5 + $0x28] sm:$0xff]
        %v218 = vld [vmem:[#allocation5 + $0x30] sm:$0xff]
        %v219 = vld [vmem:[#allocation5 + $0x38] sm:$0xff]
        %v220 = vld [vmem:[#allocation5 + $0x40] sm:$0xff]
        %v221 = vld [vmem:[#allocation5 + $0x48] sm:$0xff]
        %v222 = vld [vmem:[#allocation5 + $0x50] sm:$0xff]
        %v223 = vld [vmem:[#allocation5 + $0x58] sm:$0xff]
        %v224 = vld [vmem:[#allocation5 + $0x60] sm:$0xff]
        %v225 = vld [vmem:[#allocation5 + $0x68] sm:$0xff]
        %v226 = vld [vmem:[#allocation5 + $0x70] sm:$0xff]
        %v227 = vld [vmem:[#allocation5 + $0x78] sm:$0xff]
        %v228 = vmul.f32 %v211, %v211
        %229 = vadd.xlane.f32.xlu0 %v228
        %v230 = vpop.xlane.xlu0 %229
        %v231 = vrsqrt.pop %v230
        %v232 = vmul.f32 %v230, %v231
        %vm233 = vcmp.eq.f32.partialorder %v230, inf
        %v234 = vsel %vm233, %v230, %v232
        %vm235 = vcmp.eq.f32.partialorder %v230, 0.0
        %v236 = vand.u32 %v230, 2147483648
        %v237 = vsel %vm235, %v236, %v234
        %v238 = vmax.f32 %v237, 1e-07
        %v239 = vrcp.pop %v238
        %v240 = vmul.f32 %v211, %v239
        %241 = vmatprep.subr.mxu0 0.0
        %242 = vmatpush1.msra.mxu0 %v212
        %243 = vmatprep.subr.mxu0 0.0
        %244 = vmatpush1.msra.mxu0 %v213
        %245 = vmatprep.subr.mxu0 0.0
        %246 = vmatpush1.msra.mxu0 %v214
        %247 = vmatprep.subr.mxu0 0.0
        %248 = vmatpush1.msra.mxu0 %v215
        %249 = vmatprep.subr.mxu0 0.0
        %250 = vmatpush1.msra.mxu0 %v216
        %251 = vmatprep.subr.mxu0 0.0
        %252 = vmatpush1.msra.mxu0 %v217
        %253 = vmatprep.subr.mxu0 0.0
        %254 = vmatpush1.msra.mxu0 %v218
        %255 = vmatprep.subr.mxu0 0.0
        %256 = vmatpush1.msra.mxu0 %v219
        %257 = vmatprep.subr.mxu0 0.0
        %258 = vmatpush1.msra.mxu0 %v220
        %259 = vmatprep.subr.mxu0 0.0
        %260 = vmatpush1.msra.mxu0 %v221
        %261 = vmatprep.subr.mxu0 0.0
        %262 = vmatpush1.msra.mxu0 %v222
        %263 = vmatprep.subr.mxu0 0.0
        %264 = vmatpush1.msra.mxu0 %v223
        %265 = vmatprep.subr.mxu0 0.0
        %266 = vmatpush1.msra.mxu0 %v224
        %267 = vmatprep.subr.mxu0 0.0
        %268 = vmatpush1.msra.mxu0 %v225
        %269 = vmatprep.subr.mxu0 0.0
        %270 = vmatpush1.msra.mxu0 %v226
        %271 = vmatprep.subr.mxu0 0.0
        %272 = vmatpush1.msra.mxu0 %v227
        %273 = vmatprep.subr.mxu0 0.0
        %274 = vmatpush1.msra.mxu0 0.0
        %275 = vmatprep.subr.mxu0 0.0
        %276 = vmatpush1.msra.mxu0 0.0
        %277 = vmatprep.subr.mxu0 0.0
        %278 = vmatpush1.msra.mxu0 0.0
        %279 = vmatprep.subr.mxu0 0.0
        %280 = vmatpush1.msra.mxu0 0.0
        %281 = vmatprep.subr.mxu0 0.0
        %282 = vmatpush1.msra.mxu0 0.0
        %283 = vmatprep.subr.mxu0 0.0
        %284 = vmatpush1.msra.mxu0 0.0
        %285 = vmatprep.subr.mxu0 0.0
        %286 = vmatpush1.msra.mxu0 0.0
        %287 = vmatprep.subr.mxu0 0.0
        %288 = vmatpush1.msra.mxu0 0.0
        %289 = vmatprep.subr.mxu0 0.0
        %290 = vmatpush1.msra.mxu0 0.0
        %291 = vmatprep.subr.mxu0 0.0
        %292 = vmatpush1.msra.mxu0 0.0
        %293 = vmatprep.subr.mxu0 0.0
        %294 = vmatpush1.msra.mxu0 0.0
        %295 = vmatprep.subr.mxu0 0.0
        %296 = vmatpush1.msra.mxu0 0.0
        %297 = vmatprep.subr.mxu0 0.0
        %298 = vmatpush1.msra.mxu0 0.0
        %299 = vmatprep.subr.mxu0 0.0
        %300 = vmatpush1.msra.mxu0 0.0
        %301 = vmatprep.subr.mxu0 0.0
        %302 = vmatpush1.msra.mxu0 0.0
        %303 = vmatprep.subr.mxu0 0.0
        %304 = vmatpush1.msra.mxu0 0.0
        %305 = vmatprep.mubr.f32.mxu0 0.0
        %306 = vmatmul.mubr.f32.gmra.mrb[0].mxu0 %v240
        %v307 = vpop.f32.mrb[0].mxu0
        %v308 = vadd.f32 0.0, %v307
        %v309 = vpop.f32.mrb[0].mxu0
        %310 = vdwg.mxu0
        %v311 = vlaneseq
        %v312 = vand.u32 %v311, 127
        %vm313 = vcmp.lt.s32.totalorder %v312, 16
        %v314 = vsel %vm313, 0.0, -1e+30
        %v315 = vmul.f32 %v308, 8.333333
        %v316 = vadd.f32 %v315, %v314
        %317 = vmax.xlane.f32.xlu0 %v316
        %v318 = vpop.xlane.xlu0 %317
        %v319 = vsub.f32 %v316, %v318
        %v320 = vmul.f32 %v319, 1.442695
        %v321 = vpow.pop %v320
        %322 = vadd.xlane.f32.xlu0 %v321
        %v323 = vpop.xlane.xlu0 %322
        %v324 = vlog2.pop %v323
        %v325 = vmul.f32 %v324, 0.6931472
        %v326 = vadd.f32 %v325, %v318
        %v327 = vmul.f32 %v308, 10.0
        %v328 = vrot.slane %v327, 4
        %v329 = vmax.f32 %v327, %v328
        %v330 = vrot.slane %v329, 2
        %v331 = vmax.f32 %v329, %v330
        %v332 = vrot.slane %v331, 1
        %v333 = vmax.f32 %v331, %v332
        %v334 = vsub.f32 50.0, %v333
        %v335 = vadd.f32 %v327, %v334
        %v336 = vadd.f32 %v335, %v314
        %v337 = vmul.f32 %v336, 1.442695
        %v338 = vpow.pop %v337
        %v339 = vrot.slane %v338, 4
        %v340 = vadd.f32 %v338, %v339
        %v341 = vrot.slane %v340, 2
        %v342 = vadd.f32 %v340, %v341
        %v343 = vrot.slane %v342, 1
        %v344 = vadd.f32 %v342, %v343
        %v345 = vadd.f32 %v344, 1e-08
        %v346 = vrcp.pop %v345
        %v347 = vmul.f32 %v338, %v346
        %348 = vadd.xlane.f32.xlu0 %v347
        %v349 = vpop.xlane.xlu0 %348
        %v350 = vadd.f32 %v349, 1e-08
        %v351 = vrcp.pop %v350
        %v352 = vmul.f32 %v347, %v351
        %v353 = vrot.slane %v352, 4
        %v354 = vadd.f32 %v352, %v353
        %v355 = vrot.slane %v354, 2
        %v356 = vadd.f32 %v354, %v355
        %v357 = vrot.slane %v356, 1
        %v358 = vadd.f32 %v356, %v357
        %v359 = vadd.f32 %v358, 1e-08
        %v360 = vrcp.pop %v359
        %v361 = vmul.f32 %v352, %v360
        %362 = vadd.xlane.f32.xlu0 %v361
        %v363 = vpop.xlane.xlu0 %362
        %v364 = vadd.f32 %v363, 1e-08
        %v365 = vrcp.pop %v364
        %v366 = vmul.f32 %v361, %v365
        %v367 = vrot.slane %v366, 4
        %v368 = vadd.f32 %v366, %v367
        %v369 = vrot.slane %v368, 2
        %v370 = vadd.f32 %v368, %v369
        %v371 = vrot.slane %v370, 1
        %v372 = vadd.f32 %v370, %v371
        %v373 = vadd.f32 %v372, 1e-08
        %v374 = vrcp.pop %v373
        %v375 = vmul.f32 %v366, %v374
        %376 = vadd.xlane.f32.xlu0 %v375
        %v377 = vpop.xlane.xlu0 %376
        %v378 = vadd.f32 %v377, 1e-08
        %v379 = vrcp.pop %v378
        %v380 = vmul.f32 %v375, %v379
        %381 = vst [vmem:[%s204] sm:$0xff] %v380
        %v382 = vsub.f32 %v315, %v326
        %v383 = vmul.f32 %v380, %v382
        %384 = vadd.xlane.f32.xlu0 %v383
        %v385 = vpop.xlane.xlu0 %384
        %v386 = vrot.slane %v385, 4
        %v387 = vadd.f32 %v385, %v386
        %v388 = vrot.slane %v387, 2
        %v389 = vadd.f32 %v387, %v388
        %v390 = vrot.slane %v389, 1
        %v391 = vadd.f32 %v389, %v390
        %s392 = vtos %v391
        %s393 = ssub.f32 0.0, %s392
        %v394 = vstv %s393
        %395 = vst [vmem:[%s210] sm:$0x1] %v394
        %s396 = sand.u32 %s80, 1
        %s397 = scalar_lea.sflag [#allocation4], %s396
        %s398 = sand.u32 %s80, 1
        %s399 = smul.addr %s398, 8
        %s400 = scalar_lea.vmem [#allocation7], %s399
        %s401 = sand.u32 %s106, 1
        %s402 = scalar_lea.sflag [#allocation9], %s401
        %s403 = sand.u32 %s106, 1
        %s404 = scalar_lea.vmem [#allocation8], %s403
        // Predicated region
        $region37: #{tpu_custom_call.1} parent=27 // pred_check
          %p405 = pneg %p90
        $region38: #{tpu_custom_call.1} parent=27 // pred_check_branch
          %407 = sbr.rel (%p405) target = $region40
        $region39: #{tpu_custom_call.1} parent=27 // pred_region
          %s409 = ssub.s32 128, 128
          %410 = vsyncadd %s397, %s409
          %s411 = smul.addr %s25, 128
          %s412 = scalar_lea.hbm %s2, %s411
          %s414 = sshll.u32 %s400, 4
          %s415 = int_to_ptr.vmem [resolvable:$true] %s414
          %417 = dma.vmem_to_hbm [thread:$0]  %s415, 128, %s412, %s397
        $region40: #{tpu_custom_call.1} parent=27 // pred_fallthru
          _
        // Predicated region
        $region41: #{tpu_custom_call.1} parent=27 // pred_check
          %p418 = pneg %p116
        $region42: #{tpu_custom_call.1} parent=27 // pred_check_branch
          %420 = sbr.rel (%p418) target = $region44
        $region43: #{tpu_custom_call.1} parent=27 // pred_region
          %s422 = ssub.s32 16, 16
          %423 = vsyncadd %s402, %s422
          %s424 = smul.addr %s25, 16
          %s425 = scalar_lea.hbm %s3, %s424
          %s427 = sshll.u32 %s404, 4
          %s428 = int_to_ptr.vmem [resolvable:$true] %s427
          %430 = dma.vmem_to_hbm [thread:$0]  %s428, 16, %s425, %s402
        $region44: #{tpu_custom_call.1} parent=27 // pred_fallthru
          _
      $region28: #{tpu_custom_call.1} parent=5 // pred_fallthru
        _
      %p431 = scmp.le.s32.totalorder 2, %s20
      // Predicated region
      $region45: #{tpu_custom_call.1} parent=5 // pred_check
        %p432 = pneg %p431
      $region46: #{tpu_custom_call.1} parent=5 // pred_check_branch
        %434 = sbr.rel (%p432) target = $region48
      $region47: #{tpu_custom_call.1} parent=5 // pred_region
        %s435 = ssub.s32 %s20, 2
        // Predicated region
        $region49: #{tpu_custom_call.1} parent=47 // pred_check
          %p436 = pneg %p96
        $region50: #{tpu_custom_call.1} parent=47 // pred_check_branch
          %438 = sbr.rel (%p436) target = $region52
        $region51: #{tpu_custom_call.1} parent=47 // pred_region
          %s439 = sand.u32 %s81, 1
          %s440 = scalar_lea.sflag [#allocation4], %s439
          %s441 = sand.u32 %s81, 1
          %s442 = smul.addr %s441, 8
          %s443 = scalar_lea.vmem [#allocation7], %s442
          %444 = dma.done %s440, 128
        $region52: #{tpu_custom_call.1} parent=47 // pred_fallthru
          _
        // Predicated region
        $region53: #{tpu_custom_call.1} parent=47 // pred_check
          %p445 = pneg %p122
        $region54: #{tpu_custom_call.1} parent=47 // pred_check_branch
          %447 = sbr.rel (%p445) target = $region56
        $region55: #{tpu_custom_call.1} parent=47 // pred_region
          %s448 = sand.u32 %s107, 1
          %s449 = scalar_lea.sflag [#allocation9], %s448
          %s450 = sand.u32 %s107, 1
          %s451 = scalar_lea.vmem [#allocation8], %s450
          %452 = dma.done %s449, 16
        $region56: #{tpu_custom_call.1} parent=47 // pred_fallthru
          _
      $region48: #{tpu_custom_call.1} parent=5 // pred_fallthru
        _
    $region6: #{tpu_custom_call.1} parent=1 // loop_footer
      %s24 = sadd.s32 1, %s20
    $region7: #{tpu_custom_call.1} parent=1 // loop_footer_branch
      %19 = sbr.rel target = $region3
    $region8: #{tpu_custom_call.1} parent=1 // loop_exit
      _
    %453 = vsyncpa [#allocation3], 1
    %s454 = scalar_lea.sflag [#allocation3], 1
    %455 = vsyncpa %s454, 1
    %456 = vsyncpa [#allocation6], 1
    %457 = vsyncpa [#allocation4], 1
    %s458 = scalar_lea.sflag [#allocation4], 1
    %459 = vsyncpa %s458, 1
    %460 = vsyncpa [#allocation9], 1
    %s461 = scalar_lea.sflag [#allocation9], 1
    %462 = vsyncpa %s461, 1

</llo_original>
